<compile_context>
chip_gen: v7x
topology: tpu7x:2x2x1
jax: 0.10.0
libtpu: 0.0.40
codegen_flags: <defaults>
</compile_context>

<pallas_src>
import functools

import jax
import jax.numpy as jnp
from jax.experimental import pallas as pl
from jax.experimental.pallas import tpu as pltpu

NEG_SLOPE = 0.01   # F.leaky_relu default negative_slope
BN_EPS = 1e-5      # nn.BatchNorm2d default eps


def _leaky_relu(x):
    # leaky_relu(x) == max(x, a*x) for 0 < a < 1.
    return jnp.maximum(x, NEG_SLOPE * x)


# ---------------- fused Pallas kernel -----------------------------------------

def _fused_identity_block_kernel(x_ref, w1_ref, g1_ref, b1_ref,
                                 w2_ref, g2_ref, b2_ref,
                                 out_ref, pad_ref, *, c):
    """out = lrelu(BN2(conv2(lrelu(BN1(conv1(x))))) + x), fused & lane-dense.

    Layouts (lane index = w*C + channel):
      x_ref / out_ref : (N*H, W*C) f32 slabs
      w*_ref          : (3*W*C, W*C) f32 — three stacked block-tridiagonal
                        matrices (dy = 0,1,2); dx taps + w-padding are folded
                        into the bands, so only dy needs a data shift.
      g*_ref / b*_ref : (1, W*C) f32 — BN gamma/beta pre-tiled across w groups.
      pad_ref         : (N, H+2, W*C) f32 VMEM scratch — h-halo, reused by both
                        convs (rows 0 and H+1 stay zero).
    """
    nh, wc = x_ref.shape
    n, hp2, _ = pad_ref.shape
    h = hp2 - 2
    w_sp = wc // c
    inv_count = 1.0 / (nh * w_sp)           # 1 / (N*H*W): BN batch-stat count

    x = x_ref[...]                           # (NH, WC) f32, lane-dense load

    # Zero only the two h-halo rows, once, for both convs.
    zrow = jnp.zeros((n, 1, wc), jnp.float32)
    pad_ref[:, 0:1, :] = zrow
    pad_ref[:, h + 1:h + 2, :] = zrow

    def cross_w_channel_sum(v):
        # v: (1, W*C) row-sums. Binary-fold lane rotations (XLU) so every lane l
        # ends up holding the total over all lanes congruent to l (mod C), i.e.
        # the per-channel sum already broadcast across all w groups.
        sh = (w_sp // 2) * c
        while sh >= c:
            v = v + pltpu.roll(v, sh, axis=1)
            sh //= 2
        return v

    def conv_bn(slab, w_ref, g_ref, b_ref):
        # Build the h-halo: rows 1..H hold the activation, rows 0 / H+1 are zero.
        pad_ref[:, 1:h + 1, :] = slab.reshape(n, h, wc)
        up = pad_ref[:, 0:h, :].reshape(nh, wc)         # rows shifted for dy = 0
        down = pad_ref[:, 2:h + 2, :].reshape(nh, wc)   # rows shifted for dy = 2
        # 3x3 conv = three lane-aligned K=128 MXU matmuls (dy = 0, 1, 2).
        y = (jnp.dot(up, w_ref[0 * wc:1 * wc, :], preferred_element_type=jnp.float32)
             + jnp.dot(slab, w_ref[1 * wc:2 * wc, :], preferred_element_type=jnp.float32)
             + jnp.dot(down, w_ref[2 * wc:3 * wc, :], preferred_element_type=jnp.float32))
        # One-pass training-mode BN (biased variance) folded to scale/shift.
        csum = cross_w_channel_sum(jnp.sum(y, axis=0, keepdims=True))
        csq = cross_w_channel_sum(jnp.sum(y * y, axis=0, keepdims=True))
        mean = csum * inv_count
        var = csq * inv_count - mean * mean
        scale = g_ref[...] * jax.lax.rsqrt(var + BN_EPS)     # (1, WC), EUP rsqrt
        offs = b_ref[...] - mean * scale
        return y * scale + offs                               # lane-dense VPU work

    out1 = _leaky_relu(conv_bn(x, w1_ref, g1_ref, b1_ref))
    y2 = conv_bn(out1, w2_ref, g2_ref, b2_ref) + x            # identity shortcut
    out_ref[...] = _leaky_relu(y2)                            # unmasked 128-lane store


# ---------------- wrapper-side weight / param packing ---------------------------

def _banded_conv_weights(w, w_spatial):
    """w: (3, 3, C, F) HWIO -> (3*W*C, W*F) f32 stacked block-tridiagonal bands.

    Band dy satisfies B_dy[w_in*C + c, w_out*F + f] = w[dy, w_in - w_out + 1, c, f]
    for |w_in - w_out| <= 1 (zero elsewhere), so S_dy @ B_dy applies all three dx
    taps of kernel row dy, including the zero padding at w = 0 and w = W-1.
    """
    _, _, cc, ff = w.shape
    w = w.astype(jnp.float32)
    bands = []
    for dy in range(3):
        band = jnp.zeros((w_spatial * cc, w_spatial * ff), jnp.float32)
        for dx in range(3):
            band = band + jnp.kron(jnp.eye(w_spatial, k=1 - dx, dtype=jnp.float32),
                                   w[dy, dx])
        bands.append(band)
    return jnp.concatenate(bands, axis=0)


def identity_block(x_nchw, w1, g1, b1, w2, g2, b2):
    """IdentityBlock forward.  x_nchw: (N, C, H, W); w*: (3, 3, C, F) HWIO."""
    x = jnp.transpose(x_nchw, (0, 2, 3, 1)).astype(jnp.float32)   # NCHW -> NHWC
    n, h, w_sp, c = x.shape
    f = w1.shape[-1]
    assert c == f and w2.shape == (3, 3, f, f), "identity shortcut needs ni == nf"
    assert w_sp & (w_sp - 1) == 0, "cross-w roll reduction assumes power-of-two W"
    nh, wc = n * h, w_sp * c

    # Lane-dense slab + pre-tiled per-channel params (free XLA-side reshapes).
    x_slab = x.reshape(nh, wc)                                    # (N*H, W*C)
    tile = lambda v: jnp.tile(v.reshape(1, f).astype(jnp.float32), (1, w_sp))

    kernel = functools.partial(_fused_identity_block_kernel, c=c)
    out_slab = pl.pallas_call(
        kernel,
        out_shape=jax.ShapeDtypeStruct((nh, wc), jnp.float32),
        in_specs=[pl.BlockSpec(memory_space=pltpu.MemorySpace.VMEM)] * 7,
        out_specs=pl.BlockSpec(memory_space=pltpu.MemorySpace.VMEM),
        scratch_shapes=[pltpu.VMEM((n, h + 2, wc), jnp.float32)],  # shared h-halo
    )(x_slab,
      _banded_conv_weights(w1, w_sp), tile(g1), tile(b1),
      _banded_conv_weights(w2, w_sp), tile(g2), tile(b2))

    return jnp.transpose(out_slab.reshape(n, h, w_sp, c), (0, 3, 1, 2))  # -> NCHW


# ---------------- plain-JAX reference (correctness check) -----------------------

def _batchnorm_train_ref(x, gamma, beta):
    axes = tuple(range(x.ndim - 1))
    mean = jnp.mean(x, axis=axes, keepdims=True)
    var = jnp.mean((x - mean) ** 2, axis=axes, keepdims=True)
    return (x - mean) * jax.lax.rsqrt(var + BN_EPS) * gamma + beta


def _ref_conv3x3(x_nhwc, w):
    return jax.lax.conv_general_dilated(
        x_nhwc, w, window_strides=(1, 1), padding="SAME",
        dimension_numbers=("NHWC", "HWIO", "NHWC"))


def identity_block_ref(x_nchw, w1, g1, b1, w2, g2, b2):
    x = jnp.transpose(x_nchw, (0, 2, 3, 1)).astype(jnp.float32)
    f = w1.shape[-1]
    out = _ref_conv3x3(x, w1)
    out = _leaky_relu(_batchnorm_train_ref(out, g1.reshape(1, f), b1.reshape(1, f)))
    out = _ref_conv3x3(out, w2)
    out = _batchnorm_train_ref(out, g2.reshape(1, f), b2.reshape(1, f)) + x
    out = _leaky_relu(out)
    return jnp.transpose(out, (0, 3, 1, 2))


# ---------------- main -----------------------------------------------------------

if __name__ == "__main__":
    key = jax.random.PRNGKey(0)
    kx, kw1, kw2 = jax.random.split(key, 3)

    N, C, H, W = 2, 8, 16, 16        # ni = nf = 8, stride = 1 (module defaults)
    F_ = C                           # W*C = 128 -> fully lane-dense slabs

    x = jax.random.normal(kx, (N, C, H, W), jnp.float32)
    w1 = jax.random.normal(kw1, (3, 3, C, F_), jnp.float32) * 0.1
    w2 = jax.random.normal(kw2, (3, 3, F_, F_), jnp.float32) * 0.1
    g1 = jnp.ones((F_,), jnp.float32)   # BatchNorm2d default weight
    b1 = jnp.zeros((F_,), jnp.float32)  # BatchNorm2d default bias
    g2 = jnp.ones((F_,), jnp.float32)
    b2 = jnp.zeros((F_,), jnp.float32)

    out = jax.block_until_ready(jax.jit(identity_block)(x, w1, g1, b1, w2, g2, b2))
    ref = jax.block_until_ready(identity_block_ref(x, w1, g1, b1, w2, g2, b2))

    assert out.shape == (N, C, H, W)
    assert jnp.allclose(out, ref, rtol=1e-4, atol=1e-3), "mismatch vs reference"

    print("KERNEL_OK")
</pallas_src>

<mosaic_0001>
module attributes {stable_mosaic.version = 11 : i64} {
  func.func @_fused_identity_block_kernel(%arg0: memref<32x128xf32, #tpu.memory_space<vmem>>, %arg1: memref<384x128xf32, #tpu.memory_space<vmem>>, %arg2: memref<1x128xf32, #tpu.memory_space<vmem>>, %arg3: memref<1x128xf32, #tpu.memory_space<vmem>>, %arg4: memref<384x128xf32, #tpu.memory_space<vmem>>, %arg5: memref<1x128xf32, #tpu.memory_space<vmem>>, %arg6: memref<1x128xf32, #tpu.memory_space<vmem>>, %arg7: memref<32x128xf32, #tpu.memory_space<vmem>>, %arg8: memref<2x18x128xf32, #tpu.memory_space<vmem>>) attributes {dimension_semantics = [], scalar_prefetch = 0 : i64, scratch_operands = 1 : i64, tpu.core_type = #tpu.core_type<tc>} {
    %c0 = arith.constant 0 : index
    %c0_0 = arith.constant 0 : index
    %0 = vector.load %arg0[%c0, %c0_0] : memref<32x128xf32, #tpu.memory_space<vmem>>, vector<32x128xf32>
    %cst = arith.constant 0.000000e+00 : f32
    %1 = vector.broadcast %cst : f32 to vector<2x1x128xf32>
    %c0_1 = arith.constant 0 : index
    %c0_2 = arith.constant 0 : index
    %c0_3 = arith.constant 0 : index
    %2 = vector.load %arg8[%c0_1, %c0_2, %c0_3] : memref<2x18x128xf32, #tpu.memory_space<vmem>>, vector<2x1x128xf32>
    tpu.vector_store %arg8[%c0_1, %c0_2, %c0_3], %1 {strides = array<i32>} : memref<2x18x128xf32, #tpu.memory_space<vmem>>, vector<2x1x128xf32>,
    %c0_4 = arith.constant 0 : index
    %c17 = arith.constant 17 : index
    %c0_5 = arith.constant 0 : index
    %3 = vector.load %arg8[%c0_4, %c17, %c0_5] : memref<2x18x128xf32, #tpu.memory_space<vmem>>, vector<2x1x128xf32>
    tpu.vector_store %arg8[%c0_4, %c17, %c0_5], %1 {strides = array<i32>} : memref<2x18x128xf32, #tpu.memory_space<vmem>>, vector<2x1x128xf32>,
    %4 = vector.shape_cast %0 : vector<32x128xf32> to vector<2x16x128xf32>
    %c0_6 = arith.constant 0 : index
    %c1 = arith.constant 1 : index
    %c0_7 = arith.constant 0 : index
    %5 = vector.load %arg8[%c0_6, %c1, %c0_7] : memref<2x18x128xf32, #tpu.memory_space<vmem>>, vector<2x16x128xf32>
    tpu.vector_store %arg8[%c0_6, %c1, %c0_7], %4 {strides = array<i32>} : memref<2x18x128xf32, #tpu.memory_space<vmem>>, vector<2x16x128xf32>,
    %c0_8 = arith.constant 0 : index
    %c0_9 = arith.constant 0 : index
    %c0_10 = arith.constant 0 : index
    %6 = vector.load %arg8[%c0_8, %c0_9, %c0_10] : memref<2x18x128xf32, #tpu.memory_space<vmem>>, vector<2x16x128xf32>
    %7 = vector.shape_cast %6 : vector<2x16x128xf32> to vector<32x128xf32>
    %c0_11 = arith.constant 0 : index
    %c2 = arith.constant 2 : index
    %c0_12 = arith.constant 0 : index
    %8 = vector.load %arg8[%c0_11, %c2, %c0_12] : memref<2x18x128xf32, #tpu.memory_space<vmem>>, vector<2x16x128xf32>
    %9 = vector.shape_cast %8 : vector<2x16x128xf32> to vector<32x128xf32>
    %c0_13 = arith.constant 0 : index
    %c0_14 = arith.constant 0 : index
    %10 = vector.load %arg1[%c0_13, %c0_14] : memref<384x128xf32, #tpu.memory_space<vmem>>, vector<128x128xf32>
    %cst_15 = arith.constant dense<0.000000e+00> : vector<32x128xf32>
    %11 = tpu.matmul %7, %10, %cst_15 {dimension_numbers = #tpu.dot_dimension_numbers<[1], [0], [0], [1], [0, 0, 1, 1], [], []>} : vector<32x128xf32>, vector<128x128xf32>, vector<32x128xf32> -> vector<32x128xf32>
    %c128 = arith.constant 128 : index
    %c0_16 = arith.constant 0 : index
    %12 = vector.load %arg1[%c128, %c0_16] : memref<384x128xf32, #tpu.memory_space<vmem>>, vector<128x128xf32>
    %cst_17 = arith.constant dense<0.000000e+00> : vector<32x128xf32>
    %13 = tpu.matmul %0, %12, %cst_17 {dimension_numbers = #tpu.dot_dimension_numbers<[1], [0], [0], [1], [0, 0, 1, 1], [], []>} : vector<32x128xf32>, vector<128x128xf32>, vector<32x128xf32> -> vector<32x128xf32>
    %14 = arith.addf %11, %13 : vector<32x128xf32>
    %c256 = arith.constant 256 : index
    %c0_18 = arith.constant 0 : index
    %15 = vector.load %arg1[%c256, %c0_18] : memref<384x128xf32, #tpu.memory_space<vmem>>, vector<128x128xf32>
    %cst_19 = arith.constant dense<0.000000e+00> : vector<32x128xf32>
    %16 = tpu.matmul %9, %15, %cst_19 {dimension_numbers = #tpu.dot_dimension_numbers<[1], [0], [0], [1], [0, 0, 1, 1], [], []>} : vector<32x128xf32>, vector<128x128xf32>, vector<32x128xf32> -> vector<32x128xf32>
    %17 = arith.addf %14, %16 : vector<32x128xf32>
    %cst_20 = arith.constant dense<0.000000e+00> : vector<128xf32>
    %18 = vector.multi_reduction <add>, %17, %cst_20 [0] : vector<32x128xf32> to vector<128xf32>
    %19 = vector.shape_cast %18 : vector<128xf32> to vector<1x128xf32>
    %c64_i32 = arith.constant 64 : i32
    %20 = tpu.dynamic_rotate %19 by %c64_i32 dim 1 : vector<1x128xf32>, i32 -> vector<1x128xf32>
    %21 = arith.addf %19, %20 : vector<1x128xf32>
    %c32_i32 = arith.constant 32 : i32
    %22 = tpu.dynamic_rotate %21 by %c32_i32 dim 1 : vector<1x128xf32>, i32 -> vector<1x128xf32>
    %23 = arith.addf %21, %22 : vector<1x128xf32>
    %c16_i32 = arith.constant 16 : i32
    %24 = tpu.dynamic_rotate %23 by %c16_i32 dim 1 : vector<1x128xf32>, i32 -> vector<1x128xf32>
    %25 = arith.addf %23, %24 : vector<1x128xf32>
    %c8_i32 = arith.constant 8 : i32
    %26 = tpu.dynamic_rotate %25 by %c8_i32 dim 1 : vector<1x128xf32>, i32 -> vector<1x128xf32>
    %27 = arith.addf %25, %26 : vector<1x128xf32>
    %28 = arith.mulf %17, %17 : vector<32x128xf32>
    %cst_21 = arith.constant dense<0.000000e+00> : vector<128xf32>
    %29 = vector.multi_reduction <add>, %28, %cst_21 [0] : vector<32x128xf32> to vector<128xf32>
    %30 = vector.shape_cast %29 : vector<128xf32> to vector<1x128xf32>
    %c64_i32_22 = arith.constant 64 : i32
    %31 = tpu.dynamic_rotate %30 by %c64_i32_22 dim 1 : vector<1x128xf32>, i32 -> vector<1x128xf32>
    %32 = arith.addf %30, %31 : vector<1x128xf32>
    %c32_i32_23 = arith.constant 32 : i32
    %33 = tpu.dynamic_rotate %32 by %c32_i32_23 dim 1 : vector<1x128xf32>, i32 -> vector<1x128xf32>
    %34 = arith.addf %32, %33 : vector<1x128xf32>
    %c16_i32_24 = arith.constant 16 : i32
    %35 = tpu.dynamic_rotate %34 by %c16_i32_24 dim 1 : vector<1x128xf32>, i32 -> vector<1x128xf32>
    %36 = arith.addf %34, %35 : vector<1x128xf32>
    %c8_i32_25 = arith.constant 8 : i32
    %37 = tpu.dynamic_rotate %36 by %c8_i32_25 dim 1 : vector<1x128xf32>, i32 -> vector<1x128xf32>
    %38 = arith.addf %36, %37 : vector<1x128xf32>
    %cst_26 = arith.constant 0.001953125 : f32
    %39 = vector.broadcast %cst_26 : f32 to vector<1x128xf32>
    %40 = arith.mulf %27, %39 : vector<1x128xf32>
    %cst_27 = arith.constant 0.001953125 : f32
    %41 = vector.broadcast %cst_27 : f32 to vector<1x128xf32>
    %42 = arith.mulf %38, %41 : vector<1x128xf32>
    %43 = arith.mulf %40, %40 : vector<1x128xf32>
    %44 = arith.subf %42, %43 : vector<1x128xf32>
    %c0_28 = arith.constant 0 : index
    %c0_29 = arith.constant 0 : index
    %45 = vector.load %arg2[%c0_28, %c0_29] : memref<1x128xf32, #tpu.memory_space<vmem>>, vector<1x128xf32>
    %cst_30 = arith.constant 9.99999974E-6 : f32
    %46 = vector.broadcast %cst_30 : f32 to vector<1x128xf32>
    %47 = arith.addf %44, %46 : vector<1x128xf32>
    %48 = math.rsqrt %47 : vector<1x128xf32>
    %49 = arith.mulf %45, %48 : vector<1x128xf32>
    %c0_31 = arith.constant 0 : index
    %c0_32 = arith.constant 0 : index
    %50 = vector.load %arg3[%c0_31, %c0_32] : memref<1x128xf32, #tpu.memory_space<vmem>>, vector<1x128xf32>
    %51 = arith.mulf %40, %49 : vector<1x128xf32>
    %52 = arith.subf %50, %51 : vector<1x128xf32>
    %53 = vector.broadcast %49 : vector<1x128xf32> to vector<32x128xf32>
    %54 = arith.mulf %17, %53 : vector<32x128xf32>
    %55 = vector.broadcast %52 : vector<1x128xf32> to vector<32x128xf32>
    %56 = arith.addf %54, %55 : vector<32x128xf32>
    %cst_33 = arith.constant 0.00999999977 : f32
    %57 = vector.broadcast %cst_33 : f32 to vector<32x128xf32>
    %58 = arith.mulf %57, %56 : vector<32x128xf32>
    %59 = arith.maximumf %56, %58 : vector<32x128xf32>
    %60 = vector.shape_cast %59 : vector<32x128xf32> to vector<2x16x128xf32>
    %c0_34 = arith.constant 0 : index
    %c1_35 = arith.constant 1 : index
    %c0_36 = arith.constant 0 : index
    %61 = vector.load %arg8[%c0_34, %c1_35, %c0_36] : memref<2x18x128xf32, #tpu.memory_space<vmem>>, vector<2x16x128xf32>
    tpu.vector_store %arg8[%c0_34, %c1_35, %c0_36], %60 {strides = array<i32>} : memref<2x18x128xf32, #tpu.memory_space<vmem>>, vector<2x16x128xf32>,
    %c0_37 = arith.constant 0 : index
    %c0_38 = arith.constant 0 : index
    %c0_39 = arith.constant 0 : index
    %62 = vector.load %arg8[%c0_37, %c0_38, %c0_39] : memref<2x18x128xf32, #tpu.memory_space<vmem>>, vector<2x16x128xf32>
    %63 = vector.shape_cast %62 : vector<2x16x128xf32> to vector<32x128xf32>
    %c0_40 = arith.constant 0 : index
    %c2_41 = arith.constant 2 : index
    %c0_42 = arith.constant 0 : index
    %64 = vector.load %arg8[%c0_40, %c2_41, %c0_42] : memref<2x18x128xf32, #tpu.memory_space<vmem>>, vector<2x16x128xf32>
    %65 = vector.shape_cast %64 : vector<2x16x128xf32> to vector<32x128xf32>
    %c0_43 = arith.constant 0 : index
    %c0_44 = arith.constant 0 : index
    %66 = vector.load %arg4[%c0_43, %c0_44] : memref<384x128xf32, #tpu.memory_space<vmem>>, vector<128x128xf32>
    %cst_45 = arith.constant dense<0.000000e+00> : vector<32x128xf32>
    %67 = tpu.matmul %63, %66, %cst_45 {dimension_numbers = #tpu.dot_dimension_numbers<[1], [0], [0], [1], [0, 0, 1, 1], [], []>} : vector<32x128xf32>, vector<128x128xf32>, vector<32x128xf32> -> vector<32x128xf32>
    %c128_46 = arith.constant 128 : index
    %c0_47 = arith.constant 0 : index
    %68 = vector.load %arg4[%c128_46, %c0_47] : memref<384x128xf32, #tpu.memory_space<vmem>>, vector<128x128xf32>
    %cst_48 = arith.constant dense<0.000000e+00> : vector<32x128xf32>
    %69 = tpu.matmul %59, %68, %cst_48 {dimension_numbers = #tpu.dot_dimension_numbers<[1], [0], [0], [1], [0, 0, 1, 1], [], []>} : vector<32x128xf32>, vector<128x128xf32>, vector<32x128xf32> -> vector<32x128xf32>
    %70 = arith.addf %67, %69 : vector<32x128xf32>
    %c256_49 = arith.constant 256 : index
    %c0_50 = arith.constant 0 : index
    %71 = vector.load %arg4[%c256_49, %c0_50] : memref<384x128xf32, #tpu.memory_space<vmem>>, vector<128x128xf32>
    %cst_51 = arith.constant dense<0.000000e+00> : vector<32x128xf32>
    %72 = tpu.matmul %65, %71, %cst_51 {dimension_numbers = #tpu.dot_dimension_numbers<[1], [0], [0], [1], [0, 0, 1, 1], [], []>} : vector<32x128xf32>, vector<128x128xf32>, vector<32x128xf32> -> vector<32x128xf32>
    %73 = arith.addf %70, %72 : vector<32x128xf32>
    %cst_52 = arith.constant dense<0.000000e+00> : vector<128xf32>
    %74 = vector.multi_reduction <add>, %73, %cst_52 [0] : vector<32x128xf32> to vector<128xf32>
    %75 = vector.shape_cast %74 : vector<128xf32> to vector<1x128xf32>
    %c64_i32_53 = arith.constant 64 : i32
    %76 = tpu.dynamic_rotate %75 by %c64_i32_53 dim 1 : vector<1x128xf32>, i32 -> vector<1x128xf32>
    %77 = arith.addf %75, %76 : vector<1x128xf32>
    %c32_i32_54 = arith.constant 32 : i32
    %78 = tpu.dynamic_rotate %77 by %c32_i32_54 dim 1 : vector<1x128xf32>, i32 -> vector<1x128xf32>
    %79 = arith.addf %77, %78 : vector<1x128xf32>
    %c16_i32_55 = arith.constant 16 : i32
    %80 = tpu.dynamic_rotate %79 by %c16_i32_55 dim 1 : vector<1x128xf32>, i32 -> vector<1x128xf32>
    %81 = arith.addf %79, %80 : vector<1x128xf32>
    %c8_i32_56 = arith.constant 8 : i32
    %82 = tpu.dynamic_rotate %81 by %c8_i32_56 dim 1 : vector<1x128xf32>, i32 -> vector<1x128xf32>
    %83 = arith.addf %81, %82 : vector<1x128xf32>
    %84 = arith.mulf %73, %73 : vector<32x128xf32>
    %cst_57 = arith.constant dense<0.000000e+00> : vector<128xf32>
    %85 = vector.multi_reduction <add>, %84, %cst_57 [0] : vector<32x128xf32> to vector<128xf32>
    %86 = vector.shape_cast %85 : vector<128xf32> to vector<1x128xf32>
    %c64_i32_58 = arith.constant 64 : i32
    %87 = tpu.dynamic_rotate %86 by %c64_i32_58 dim 1 : vector<1x128xf32>, i32 -> vector<1x128xf32>
    %88 = arith.addf %86, %87 : vector<1x128xf32>
    %c32_i32_59 = arith.constant 32 : i32
    %89 = tpu.dynamic_rotate %88 by %c32_i32_59 dim 1 : vector<1x128xf32>, i32 -> vector<1x128xf32>
    %90 = arith.addf %88, %89 : vector<1x128xf32>
    %c16_i32_60 = arith.constant 16 : i32
    %91 = tpu.dynamic_rotate %90 by %c16_i32_60 dim 1 : vector<1x128xf32>, i32 -> vector<1x128xf32>
    %92 = arith.addf %90, %91 : vector<1x128xf32>
    %c8_i32_61 = arith.constant 8 : i32
    %93 = tpu.dynamic_rotate %92 by %c8_i32_61 dim 1 : vector<1x128xf32>, i32 -> vector<1x128xf32>
    %94 = arith.addf %92, %93 : vector<1x128xf32>
    %cst_62 = arith.constant 0.001953125 : f32
    %95 = vector.broadcast %cst_62 : f32 to vector<1x128xf32>
    %96 = arith.mulf %83, %95 : vector<1x128xf32>
    %cst_63 = arith.constant 0.001953125 : f32
    %97 = vector.broadcast %cst_63 : f32 to vector<1x128xf32>
    %98 = arith.mulf %94, %97 : vector<1x128xf32>
    %99 = arith.mulf %96, %96 : vector<1x128xf32>
    %100 = arith.subf %98, %99 : vector<1x128xf32>
    %c0_64 = arith.constant 0 : index
    %c0_65 = arith.constant 0 : index
    %101 = vector.load %arg5[%c0_64, %c0_65] : memref<1x128xf32, #tpu.memory_space<vmem>>, vector<1x128xf32>
    %cst_66 = arith.constant 9.99999974E-6 : f32
    %102 = vector.broadcast %cst_66 : f32 to vector<1x128xf32>
    %103 = arith.addf %100, %102 : vector<1x128xf32>
    %104 = math.rsqrt %103 : vector<1x128xf32>
    %105 = arith.mulf %101, %104 : vector<1x128xf32>
    %c0_67 = arith.constant 0 : index
    %c0_68 = arith.constant 0 : index
    %106 = vector.load %arg6[%c0_67, %c0_68] : memref<1x128xf32, #tpu.memory_space<vmem>>, vector<1x128xf32>
    %107 = arith.mulf %96, %105 : vector<1x128xf32>
    %108 = arith.subf %106, %107 : vector<1x128xf32>
    %109 = vector.broadcast %105 : vector<1x128xf32> to vector<32x128xf32>
    %110 = arith.mulf %73, %109 : vector<32x128xf32>
    %111 = vector.broadcast %108 : vector<1x128xf32> to vector<32x128xf32>
    %112 = arith.addf %110, %111 : vector<32x128xf32>
    %113 = arith.addf %112, %0 : vector<32x128xf32>
    %cst_69 = arith.constant 0.00999999977 : f32
    %114 = vector.broadcast %cst_69 : f32 to vector<32x128xf32>
    %115 = arith.mulf %114, %113 : vector<32x128xf32>
    %116 = arith.maximumf %113, %115 : vector<32x128xf32>
    %c0_70 = arith.constant 0 : index
    %c0_71 = arith.constant 0 : index
    %117 = vector.load %arg7[%c0_70, %c0_71] : memref<32x128xf32, #tpu.memory_space<vmem>>, vector<32x128xf32>
    tpu.vector_store %arg7[%c0_70, %c0_71], %116 {strides = array<i32>} : memref<32x128xf32, #tpu.memory_space<vmem>>, vector<32x128xf32>,
    return
  }
}

</mosaic_0001>

<llo_original>
// kernel: identity_block.1
$region0: #{identity_block.1}
  #allocation0 [shape = 'u32[]', space=smem, size = 0x4, offset = 0x4, fixed_abs, tag = 'smem constant byte address 0x4 - core index']
  #allocation1 [shape = 'u32[144,128]{1,0:T(1,128)}', space=vmem, size = 0x12000, scoped, tag = 'internal scratch']
  #allocation2 [shape = 'f32[2,18,128]{2,1,0:T(8,128)}', space=vmem, size = 0x6000, scoped, tag = 'scratch operand']
  %s0 = inlined_call_operand.vmem [shape: f32[32,128], index: 0, kind: input, shape index: {}]
  %s1 = inlined_call_operand.vmem [shape: f32[384,128], index: 1, kind: input, shape index: {}]
  %s2 = inlined_call_operand.vmem [shape: f32[1,128], index: 2, kind: input, shape index: {}]
  %s3 = inlined_call_operand.vmem [shape: f32[1,128], index: 3, kind: input, shape index: {}]
  %s4 = inlined_call_operand.vmem [shape: f32[384,128], index: 4, kind: input, shape index: {}]
  %s5 = inlined_call_operand.vmem [shape: f32[1,128], index: 5, kind: input, shape index: {}]
  %s6 = inlined_call_operand.vmem [shape: f32[1,128], index: 6, kind: input, shape index: {}]
  %s7 = inlined_call_operand.vmem [shape: f32[32,128], index: 7, kind: output, shape index: {}]
  %s8 = sld [smem:[#allocation0]]
  $region38: #{identity_block.1} parent=0
    _
  %s10 = ssub.s32 1, %s8
  %s11 = scalar_select 0, %s10, %s8
  // Predicated region
  $region2: #{identity_block.1} parent=0 // pred_check
    _
  $region3: #{identity_block.1} parent=0 // pred_check_branch
    %13 = sbr.rel (0) target = $region5
  $region4: #{identity_block.1} parent=0 // pred_region
    _
  $region5: #{identity_block.1} parent=0 // pred_fallthru
    _
  // Predicated region
  $region6: #{identity_block.1} parent=0 // pred_check
    _
  $region7: #{identity_block.1} parent=0 // pred_check_branch
    %15 = sbr.rel (0) target = $region9
  $region8: #{identity_block.1} parent=0 // pred_region
    _
  $region9: #{identity_block.1} parent=0 // pred_fallthru
    _
  // Predicated region
  $region10: #{identity_block.1} parent=0 // pred_check
    _
  $region11: #{identity_block.1} parent=0 // pred_check_branch
    %17 = sbr.rel (0) target = $region13
  $region12: #{identity_block.1} parent=0 // pred_region
    _
  $region13: #{identity_block.1} parent=0 // pred_fallthru
    _
  // Predicated region
  $region14: #{identity_block.1} parent=0 // pred_check
    _
  $region15: #{identity_block.1} parent=0 // pred_check_branch
    %19 = sbr.rel (0) target = $region17
  $region16: #{identity_block.1} parent=0 // pred_region
    _
  $region17: #{identity_block.1} parent=0 // pred_fallthru
    _
  // Predicated region
  $region18: #{identity_block.1} parent=0 // pred_check
    _
  $region19: #{identity_block.1} parent=0 // pred_check_branch
    %21 = sbr.rel (0) target = $region21
  $region20: #{identity_block.1} parent=0 // pred_region
    _
  $region21: #{identity_block.1} parent=0 // pred_fallthru
    _
  // Predicated region
  $region22: #{identity_block.1} parent=0 // pred_check
    _
  $region23: #{identity_block.1} parent=0 // pred_check_branch
    %23 = sbr.rel (0) target = $region25
  $region24: #{identity_block.1} parent=0 // pred_region
    _
  $region25: #{identity_block.1} parent=0 // pred_fallthru
    _
  // Predicated region
  $region26: #{identity_block.1} parent=0 // pred_check
    _
  $region27: #{identity_block.1} parent=0 // pred_check_branch
    %25 = sbr.rel (0) target = $region29
  $region28: #{identity_block.1} parent=0 // pred_region
    _
  $region29: #{identity_block.1} parent=0 // pred_fallthru
    _
  %v26 = vld [vmem:[%s0] sm:$0xff]
  %v27 = vld [vmem:[%s0 + $0x8] sm:$0xff]
  %v28 = vld [vmem:[%s0 + $0x10] sm:$0xff]
  %v29 = vld [vmem:[%s0 + $0x18] sm:$0xff]
  %30 = vst [vmem:[#allocation2] sm:$0x1] 0.0
  %31 = vst [vmem:[#allocation2 + $0x18] sm:$0x1] 0.0
  %32 = vst [vmem:[#allocation2 + $0x11] sm:$0x1] 0.0
  %33 = vst [vmem:[#allocation2 + $0x29] sm:$0x1] 0.0
  %34 = vst [vmem:[#allocation2 + $0x1] sm:$0xff] %v26
  %35 = vst [vmem:[#allocation2 + $0x9] sm:$0xff] %v27
  %36 = vst [vmem:[#allocation2 + $0x19] sm:$0xff] %v28
  %37 = vst [vmem:[#allocation2 + $0x21] sm:$0xff] %v29
  %v38 = vld [vmem:[#allocation2] sm:$0xff]
  %v39 = vld [vmem:[#allocation2 + $0x8] sm:$0xff]
  %v40 = vld [vmem:[#allocation2 + $0x18] sm:$0xff]
  %v41 = vld [vmem:[#allocation2 + $0x20] sm:$0xff]
  %v42 = vld [vmem:[#allocation2 + $0x2] sm:$0xff]
  %v43 = vld [vmem:[#allocation2 + $0xa] sm:$0xff]
  %v44 = vld [vmem:[#allocation2 + $0x1a] sm:$0xff]
  %v45 = vld [vmem:[#allocation2 + $0x22] sm:$0xff]
  %v46 = vld [vmem:[%s1] sm:$0xff]
  %v47 = vld [vmem:[%s1 + $0x8] sm:$0xff]
  %v48 = vld [vmem:[%s1 + $0x10] sm:$0xff]
  %v49 = vld [vmem:[%s1 + $0x18] sm:$0xff]
  %v50 = vld [vmem:[%s1 + $0x20] sm:$0xff]
  %v51 = vld [vmem:[%s1 + $0x28] sm:$0xff]
  %v52 = vld [vmem:[%s1 + $0x30] sm:$0xff]
  %v53 = vld [vmem:[%s1 + $0x38] sm:$0xff]
  %v54 = vld [vmem:[%s1 + $0x40] sm:$0xff]
  %v55 = vld [vmem:[%s1 + $0x48] sm:$0xff]
  %v56 = vld [vmem:[%s1 + $0x50] sm:$0xff]
  %v57 = vld [vmem:[%s1 + $0x58] sm:$0xff]
  %v58 = vld [vmem:[%s1 + $0x60] sm:$0xff]
  %v59 = vld [vmem:[%s1 + $0x68] sm:$0xff]
  %v60 = vld [vmem:[%s1 + $0x70] sm:$0xff]
  %v61 = vld [vmem:[%s1 + $0x78] sm:$0xff]
  %v62 = vld [vmem:[%s1 + $0x80] sm:$0xff]
  %v63 = vld [vmem:[%s1 + $0x88] sm:$0xff]
  %v64 = vld [vmem:[%s1 + $0x90] sm:$0xff]
  %v65 = vld [vmem:[%s1 + $0x98] sm:$0xff]
  %v66 = vld [vmem:[%s1 + $0xa0] sm:$0xff]
  %v67 = vld [vmem:[%s1 + $0xa8] sm:$0xff]
  %v68 = vld [vmem:[%s1 + $0xb0] sm:$0xff]
  %v69 = vld [vmem:[%s1 + $0xb8] sm:$0xff]
  %v70 = vld [vmem:[%s1 + $0xc0] sm:$0xff]
  %v71 = vld [vmem:[%s1 + $0xc8] sm:$0xff]
  %v72 = vld [vmem:[%s1 + $0xd0] sm:$0xff]
  %v73 = vld [vmem:[%s1 + $0xd8] sm:$0xff]
  %v74 = vld [vmem:[%s1 + $0xe0] sm:$0xff]
  %v75 = vld [vmem:[%s1 + $0xe8] sm:$0xff]
  %v76 = vld [vmem:[%s1 + $0xf0] sm:$0xff]
  %v77 = vld [vmem:[%s1 + $0xf8] sm:$0xff]
  %78 = vmatprep.subr.mxu0 0.0
  %79 = vmatpush1.msra.mxu0 %v62
  %80 = vmatprep.subr.mxu0 0.0
  %81 = vmatpush1.msra.mxu0 %v63
  %82 = vmatprep.subr.mxu0 0.0
  %83 = vmatpush1.msra.mxu0 %v64
  %84 = vmatprep.subr.mxu0 0.0
  %85 = vmatpush1.msra.mxu0 %v65
  %86 = vmatprep.subr.mxu0 0.0
  %87 = vmatpush1.msra.mxu0 %v66
  %88 = vmatprep.subr.mxu0 0.0
  %89 = vmatpush1.msra.mxu0 %v67
  %90 = vmatprep.subr.mxu0 0.0
  %91 = vmatpush1.msra.mxu0 %v68
  %92 = vmatprep.subr.mxu0 0.0
  %93 = vmatpush1.msra.mxu0 %v69
  %94 = vmatprep.subr.mxu0 0.0
  %95 = vmatpush1.msra.mxu0 %v70
  %96 = vmatprep.subr.mxu0 0.0
  %97 = vmatpush1.msra.mxu0 %v71
  %98 = vmatprep.subr.mxu0 0.0
  %99 = vmatpush1.msra.mxu0 %v72
  %100 = vmatprep.subr.mxu0 0.0
  %101 = vmatpush1.msra.mxu0 %v73
  %102 = vmatprep.subr.mxu0 0.0
  %103 = vmatpush1.msra.mxu0 %v74
  %104 = vmatprep.subr.mxu0 0.0
  %105 = vmatpush1.msra.mxu0 %v75
  %106 = vmatprep.subr.mxu0 0.0
  %107 = vmatpush1.msra.mxu0 %v76
  %108 = vmatprep.subr.mxu0 0.0
  %109 = vmatpush1.msra.mxu0 %v77
  %110 = vmatprep.subr.mxu0 0.0
  %111 = vmatpush1.msra.mxu0 0.0
  %112 = vmatprep.subr.mxu0 0.0
  %113 = vmatpush1.msra.mxu0 0.0
  %114 = vmatprep.subr.mxu0 0.0
  %115 = vmatpush1.msra.mxu0 0.0
  %116 = vmatprep.subr.mxu0 0.0
  %117 = vmatpush1.msra.mxu0 0.0
  %118 = vmatprep.subr.mxu0 0.0
  %119 = vmatpush1.msra.mxu0 0.0
  %120 = vmatprep.subr.mxu0 0.0
  %121 = vmatpush1.msra.mxu0 0.0
  %122 = vmatprep.subr.mxu0 0.0
  %123 = vmatpush1.msra.mxu0 0.0
  %124 = vmatprep.subr.mxu0 0.0
  %125 = vmatpush1.msra.mxu0 0.0
  %126 = vmatprep.subr.mxu0 0.0
  %127 = vmatpush1.msra.mxu0 0.0
  %128 = vmatprep.subr.mxu0 0.0
  %129 = vmatpush1.msra.mxu0 0.0
  %130 = vmatprep.subr.mxu0 0.0
  %131 = vmatpush1.msra.mxu0 0.0
  %132 = vmatprep.subr.mxu0 0.0
  %133 = vmatpush1.msra.mxu0 0.0
  %134 = vmatprep.subr.mxu0 0.0
  %135 = vmatpush1.msra.mxu0 0.0
  %136 = vmatprep.subr.mxu0 0.0
  %137 = vmatpush1.msra.mxu0 0.0
  %138 = vmatprep.subr.mxu0 0.0
  %139 = vmatpush1.msra.mxu0 0.0
  %140 = vmatprep.subr.mxu0 0.0
  %141 = vmatpush1.msra.mxu0 0.0
  %142 = vmatprep.mubr.f32.mxu0 0.0
  %143 = vmatmul.mubr.f32.gmra.mrb[0].mxu0 %v26
  %v144 = vpop.f32.mrb[0].mxu0
  %v145 = vadd.f32 0.0, %v144
  %v146 = vpop.f32.mrb[0].mxu0
  %147 = vmatprep.mubr.f32.mxu0 0.0
  %148 = vmatmul.mubr.f32.gmra.mrb[0].mxu0 %v27
  %v149 = vpop.f32.mrb[0].mxu0
  %v150 = vadd.f32 0.0, %v149
  %v151 = vpop.f32.mrb[0].mxu0
  %152 = vmatprep.mubr.f32.mxu0 0.0
  %153 = vmatmul.mubr.f32.gmra.mrb[0].mxu0 %v28
  %v154 = vpop.f32.mrb[0].mxu0
  %v155 = vadd.f32 0.0, %v154
  %v156 = vpop.f32.mrb[0].mxu0
  %157 = vmatprep.mubr.f32.mxu0 0.0
  %158 = vmatmul.mubr.f32.gmra.mrb[0].mxu0 %v29
  %v159 = vpop.f32.mrb[0].mxu0
  %v160 = vadd.f32 0.0, %v159
  %v161 = vpop.f32.mrb[0].mxu0
  %162 = vdwg.mxu0
  %163 = vmatprep.subr.mxu0 0.0
  %164 = vmatpush1.msra.mxu0 %v46
  %165 = vmatprep.subr.mxu0 0.0
  %166 = vmatpush1.msra.mxu0 %v47
  %167 = vmatprep.subr.mxu0 0.0
  %168 = vmatpush1.msra.mxu0 %v48
  %169 = vmatprep.subr.mxu0 0.0
  %170 = vmatpush1.msra.mxu0 %v49
  %171 = vmatprep.subr.mxu0 0.0
  %172 = vmatpush1.msra.mxu0 %v50
  %173 = vmatprep.subr.mxu0 0.0
  %174 = vmatpush1.msra.mxu0 %v51
  %175 = vmatprep.subr.mxu0 0.0
  %176 = vmatpush1.msra.mxu0 %v52
  %177 = vmatprep.subr.mxu0 0.0
  %178 = vmatpush1.msra.mxu0 %v53
  %179 = vmatprep.subr.mxu0 0.0
  %180 = vmatpush1.msra.mxu0 %v54
  %181 = vmatprep.subr.mxu0 0.0
  %182 = vmatpush1.msra.mxu0 %v55
  %183 = vmatprep.subr.mxu0 0.0
  %184 = vmatpush1.msra.mxu0 %v56
  %185 = vmatprep.subr.mxu0 0.0
  %186 = vmatpush1.msra.mxu0 %v57
  %187 = vmatprep.subr.mxu0 0.0
  %188 = vmatpush1.msra.mxu0 %v58
  %189 = vmatprep.subr.mxu0 0.0
  %190 = vmatpush1.msra.mxu0 %v59
  %191 = vmatprep.subr.mxu0 0.0
  %192 = vmatpush1.msra.mxu0 %v60
  %193 = vmatprep.subr.mxu0 0.0
  %194 = vmatpush1.msra.mxu0 %v61
  %195 = vmatprep.subr.mxu0 0.0
  %196 = vmatpush1.msra.mxu0 0.0
  %197 = vmatprep.subr.mxu0 0.0
  %198 = vmatpush1.msra.mxu0 0.0
  %199 = vmatprep.subr.mxu0 0.0
  %200 = vmatpush1.msra.mxu0 0.0
  %201 = vmatprep.subr.mxu0 0.0
  %202 = vmatpush1.msra.mxu0 0.0
  %203 = vmatprep.subr.mxu0 0.0
  %204 = vmatpush1.msra.mxu0 0.0
  %205 = vmatprep.subr.mxu0 0.0
  %206 = vmatpush1.msra.mxu0 0.0
  %207 = vmatprep.subr.mxu0 0.0
  %208 = vmatpush1.msra.mxu0 0.0
  %209 = vmatprep.subr.mxu0 0.0
  %210 = vmatpush1.msra.mxu0 0.0
  %211 = vmatprep.subr.mxu0 0.0
  %212 = vmatpush1.msra.mxu0 0.0
  %213 = vmatprep.subr.mxu0 0.0
  %214 = vmatpush1.msra.mxu0 0.0
  %215 = vmatprep.subr.mxu0 0.0
  %216 = vmatpush1.msra.mxu0 0.0
  %217 = vmatprep.subr.mxu0 0.0
  %218 = vmatpush1.msra.mxu0 0.0
  %219 = vmatprep.subr.mxu0 0.0
  %220 = vmatpush1.msra.mxu0 0.0
  %221 = vmatprep.subr.mxu0 0.0
  %222 = vmatpush1.msra.mxu0 0.0
  %223 = vmatprep.subr.mxu0 0.0
  %224 = vmatpush1.msra.mxu0 0.0
  %225 = vmatprep.subr.mxu0 0.0
  %226 = vmatpush1.msra.mxu0 0.0
  %227 = vmatprep.mubr.f32.mxu0 0.0
  %228 = vmatmul.mubr.f32.gmra.mrb[0].mxu0 %v38
  %v229 = vpop.f32.mrb[0].mxu0
  %v230 = vadd.f32 %v145, %v229
  %v231 = vpop.f32.mrb[0].mxu0
  %232 = vmatprep.mubr.f32.mxu0 0.0
  %233 = vmatmul.mubr.f32.gmra.mrb[0].mxu0 %v39
  %v234 = vpop.f32.mrb[0].mxu0
  %v235 = vadd.f32 %v150, %v234
  %v236 = vpop.f32.mrb[0].mxu0
  %237 = vmatprep.mubr.f32.mxu0 0.0
  %238 = vmatmul.mubr.f32.gmra.mrb[0].mxu0 %v40
  %v239 = vpop.f32.mrb[0].mxu0
  %v240 = vadd.f32 %v155, %v239
  %v241 = vpop.f32.mrb[0].mxu0
  %242 = vmatprep.mubr.f32.mxu0 0.0
  %243 = vmatmul.mubr.f32.gmra.mrb[0].mxu0 %v41
  %v244 = vpop.f32.mrb[0].mxu0
  %v245 = vadd.f32 %v160, %v244
  %v246 = vpop.f32.mrb[0].mxu0
  %247 = vdwg.mxu0
  %v248 = vld [vmem:[%s1 + $0x100] sm:$0xff]
  %v249 = vld [vmem:[%s1 + $0x108] sm:$0xff]
  %v250 = vld [vmem:[%s1 + $0x110] sm:$0xff]
  %v251 = vld [vmem:[%s1 + $0x118] sm:$0xff]
  %v252 = vld [vmem:[%s1 + $0x120] sm:$0xff]
  %v253 = vld [vmem:[%s1 + $0x128] sm:$0xff]
  %v254 = vld [vmem:[%s1 + $0x130] sm:$0xff]
  %v255 = vld [vmem:[%s1 + $0x138] sm:$0xff]
  %v256 = vld [vmem:[%s1 + $0x140] sm:$0xff]
  %v257 = vld [vmem:[%s1 + $0x148] sm:$0xff]
  %v258 = vld [vmem:[%s1 + $0x150] sm:$0xff]
  %v259 = vld [vmem:[%s1 + $0x158] sm:$0xff]
  %v260 = vld [vmem:[%s1 + $0x160] sm:$0xff]
  %v261 = vld [vmem:[%s1 + $0x168] sm:$0xff]
  %v262 = vld [vmem:[%s1 + $0x170] sm:$0xff]
  %v263 = vld [vmem:[%s1 + $0x178] sm:$0xff]
  %264 = vmatprep.subr.mxu0 0.0
  %265 = vmatpush1.msra.mxu0 %v248
  %266 = vmatprep.subr.mxu0 0.0
  %267 = vmatpush1.msra.mxu0 %v249
  %268 = vmatprep.subr.mxu0 0.0
  %269 = vmatpush1.msra.mxu0 %v250
  %270 = vmatprep.subr.mxu0 0.0
  %271 = vmatpush1.msra.mxu0 %v251
  %272 = vmatprep.subr.mxu0 0.0
  %273 = vmatpush1.msra.mxu0 %v252
  %274 = vmatprep.subr.mxu0 0.0
  %275 = vmatpush1.msra.mxu0 %v253
  %276 = vmatprep.subr.mxu0 0.0
  %277 = vmatpush1.msra.mxu0 %v254
  %278 = vmatprep.subr.mxu0 0.0
  %279 = vmatpush1.msra.mxu0 %v255
  %280 = vmatprep.subr.mxu0 0.0
  %281 = vmatpush1.msra.mxu0 %v256
  %282 = vmatprep.subr.mxu0 0.0
  %283 = vmatpush1.msra.mxu0 %v257
  %284 = vmatprep.subr.mxu0 0.0
  %285 = vmatpush1.msra.mxu0 %v258
  %286 = vmatprep.subr.mxu0 0.0
  %287 = vmatpush1.msra.mxu0 %v259
  %288 = vmatprep.subr.mxu0 0.0
  %289 = vmatpush1.msra.mxu0 %v260
  %290 = vmatprep.subr.mxu0 0.0
  %291 = vmatpush1.msra.mxu0 %v261
  %292 = vmatprep.subr.mxu0 0.0
  %293 = vmatpush1.msra.mxu0 %v262
  %294 = vmatprep.subr.mxu0 0.0
  %295 = vmatpush1.msra.mxu0 %v263
  %296 = vmatprep.subr.mxu0 0.0
  %297 = vmatpush1.msra.mxu0 0.0
  %298 = vmatprep.subr.mxu0 0.0
  %299 = vmatpush1.msra.mxu0 0.0
  %300 = vmatprep.subr.mxu0 0.0
  %301 = vmatpush1.msra.mxu0 0.0
  %302 = vmatprep.subr.mxu0 0.0
  %303 = vmatpush1.msra.mxu0 0.0
  %304 = vmatprep.subr.mxu0 0.0
  %305 = vmatpush1.msra.mxu0 0.0
  %306 = vmatprep.subr.mxu0 0.0
  %307 = vmatpush1.msra.mxu0 0.0
  %308 = vmatprep.subr.mxu0 0.0
  %309 = vmatpush1.msra.mxu0 0.0
  %310 = vmatprep.subr.mxu0 0.0
  %311 = vmatpush1.msra.mxu0 0.0
  %312 = vmatprep.subr.mxu0 0.0
  %313 = vmatpush1.msra.mxu0 0.0
  %314 = vmatprep.subr.mxu0 0.0
  %315 = vmatpush1.msra.mxu0 0.0
  %316 = vmatprep.subr.mxu0 0.0
  %317 = vmatpush1.msra.mxu0 0.0
  %318 = vmatprep.subr.mxu0 0.0
  %319 = vmatpush1.msra.mxu0 0.0
  %320 = vmatprep.subr.mxu0 0.0
  %321 = vmatpush1.msra.mxu0 0.0
  %322 = vmatprep.subr.mxu0 0.0
  %323 = vmatpush1.msra.mxu0 0.0
  %324 = vmatprep.subr.mxu0 0.0
  %325 = vmatpush1.msra.mxu0 0.0
  %326 = vmatprep.subr.mxu0 0.0
  %327 = vmatpush1.msra.mxu0 0.0
  %328 = vmatprep.mubr.f32.mxu0 0.0
  %329 = vmatmul.mubr.f32.gmra.mrb[0].mxu0 %v42
  %v330 = vpop.f32.mrb[0].mxu0
  %v331 = vadd.f32 0.0, %v330
  %v332 = vpop.f32.mrb[0].mxu0
  %333 = vmatprep.mubr.f32.mxu0 0.0
  %334 = vmatmul.mubr.f32.gmra.mrb[0].mxu0 %v43
  %v335 = vpop.f32.mrb[0].mxu0
  %v336 = vadd.f32 0.0, %v335
  %v337 = vpop.f32.mrb[0].mxu0
  %338 = vmatprep.mubr.f32.mxu0 0.0
  %339 = vmatmul.mubr.f32.gmra.mrb[0].mxu0 %v44
  %v340 = vpop.f32.mrb[0].mxu0
  %v341 = vadd.f32 0.0, %v340
  %v342 = vpop.f32.mrb[0].mxu0
  %343 = vmatprep.mubr.f32.mxu0 0.0
  %344 = vmatmul.mubr.f32.gmra.mrb[0].mxu0 %v45
  %v345 = vpop.f32.mrb[0].mxu0
  %v346 = vadd.f32 0.0, %v345
  %v347 = vpop.f32.mrb[0].mxu0
  %348 = vdwg.mxu0
  %v349 = vadd.f32 %v230, %v331
  %v350 = vadd.f32 %v235, %v336
  %v351 = vadd.f32 %v240, %v341
  %v352 = vadd.f32 %v245, %v346
  %v353 = vadd.f32 %v349, %v350
  %v354 = vadd.f32 %v353, %v351
  %v355 = vadd.f32 %v354, %v352
  %v356 = vrot.slane %v355, 4
  %v357 = vadd.f32 %v355, %v356
  %v358 = vrot.slane %v357, 2
  %v359 = vadd.f32 %v357, %v358
  %v360 = vrot.slane %v359, 1
  %v361 = vadd.f32 %v359, %v360
  %362 = vrot.lane.b32.xlu0 %v361, 64
  %v363 = vpop.permute.xlu0 %362
  %v364 = vadd.f32 %v361, %v363
  %365 = vrot.lane.b32.xlu0 %v364, 32
  %v366 = vpop.permute.xlu0 %365
  %v367 = vadd.f32 %v364, %v366
  %368 = vrot.lane.b32.xlu0 %v367, 16
  %v369 = vpop.permute.xlu0 %368
  %v370 = vadd.f32 %v367, %v369
  %371 = vrot.lane.b32.xlu0 %v370, 8
  %v372 = vpop.permute.xlu0 %371
  %v373 = vadd.f32 %v370, %v372
  %v374 = vmul.f32 %v349, %v349
  %v375 = vmul.f32 %v350, %v350
  %v376 = vmul.f32 %v351, %v351
  %v377 = vmul.f32 %v352, %v352
  %v378 = vadd.f32 %v374, %v375
  %v379 = vadd.f32 %v378, %v376
  %v380 = vadd.f32 %v379, %v377
  %v381 = vrot.slane %v380, 4
  %v382 = vadd.f32 %v380, %v381
  %v383 = vrot.slane %v382, 2
  %v384 = vadd.f32 %v382, %v383
  %v385 = vrot.slane %v384, 1
  %v386 = vadd.f32 %v384, %v385
  %387 = vrot.lane.b32.xlu0 %v386, 64
  %v388 = vpop.permute.xlu0 %387
  %v389 = vadd.f32 %v386, %v388
  %390 = vrot.lane.b32.xlu0 %v389, 32
  %v391 = vpop.permute.xlu0 %390
  %v392 = vadd.f32 %v389, %v391
  %393 = vrot.lane.b32.xlu0 %v392, 16
  %v394 = vpop.permute.xlu0 %393
  %v395 = vadd.f32 %v392, %v394
  %396 = vrot.lane.b32.xlu0 %v395, 8
  %v397 = vpop.permute.xlu0 %396
  %v398 = vadd.f32 %v395, %v397
  %v399 = vmul.f32 %v373, 0.001953125
  %v400 = vmul.f32 %v398, 0.001953125
  %v401 = vmul.f32 %v399, %v399
  %v402 = vsub.f32 %v400, %v401
  %v403 = vld [vmem:[%s2] sm:$0x1]
  %v404 = vadd.f32 %v402, 1e-05
  %v405 = vrsqrt.pop %v404
  %v406 = vmul.f32 %v403, %v405
  %v407 = vld [vmem:[%s3] sm:$0x1]
  %v408 = vmul.f32 %v399, %v406
  %v409 = vsub.f32 %v407, %v408
  %v411 = vlaneseq
  %v412 = vshrl.u32 %v411, 7
  %v413 = vsub.s32 0, %v412
  %v414 = vrot.slane %v406, %v413
  %v416 = vmul.f32 %v349, %v414
  %v417 = vmul.f32 %v350, %v414
  %v418 = vmul.f32 %v351, %v414
  %v419 = vmul.f32 %v352, %v414
  %v421 = vlaneseq
  %v422 = vshrl.u32 %v421, 7
  %v423 = vsub.s32 0, %v422
  %v424 = vrot.slane %v409, %v423
  %v426 = vadd.f32 %v416, %v424
  %v427 = vadd.f32 %v417, %v424
  %v428 = vadd.f32 %v418, %v424
  %v429 = vadd.f32 %v419, %v424
  %v430 = vmul.f32 %v426, 0.01
  %v431 = vmul.f32 %v427, 0.01
  %v432 = vmul.f32 %v428, 0.01
  %v433 = vmul.f32 %v429, 0.01
  %v434 = vmax.f32 %v426, %v430
  %v435 = vmax.f32 %v427, %v431
  %v436 = vmax.f32 %v428, %v432
  %v437 = vmax.f32 %v429, %v433
  %438 = vst [vmem:[#allocation2 + $0x1] sm:$0xff] %v434
  %439 = vst [vmem:[#allocation2 + $0x9] sm:$0xff] %v435
  %440 = vst [vmem:[#allocation2 + $0x19] sm:$0xff] %v436
  %441 = vst [vmem:[#allocation2 + $0x21] sm:$0xff] %v437
  %v442 = vld [vmem:[#allocation2] sm:$0xff]
  %v443 = vld [vmem:[#allocation2 + $0x8] sm:$0xff]
  %v444 = vld [vmem:[#allocation2 + $0x18] sm:$0xff]
  %v445 = vld [vmem:[#allocation2 + $0x20] sm:$0xff]
  %v446 = vld [vmem:[#allocation2 + $0x2] sm:$0xff]
  %v447 = vld [vmem:[#allocation2 + $0xa] sm:$0xff]
  %v448 = vld [vmem:[#allocation2 + $0x1a] sm:$0xff]
  %v449 = vld [vmem:[#allocation2 + $0x22] sm:$0xff]
  %v450 = vld [vmem:[%s4] sm:$0xff]
  %v451 = vld [vmem:[%s4 + $0x8] sm:$0xff]
  %v452 = vld [vmem:[%s4 + $0x10] sm:$0xff]
  %v453 = vld [vmem:[%s4 + $0x18] sm:$0xff]
  %v454 = vld [vmem:[%s4 + $0x20] sm:$0xff]
  %v455 = vld [vmem:[%s4 + $0x28] sm:$0xff]
  %v456 = vld [vmem:[%s4 + $0x30] sm:$0xff]
  %v457 = vld [vmem:[%s4 + $0x38] sm:$0xff]
  %v458 = vld [vmem:[%s4 + $0x40] sm:$0xff]
  %v459 = vld [vmem:[%s4 + $0x48] sm:$0xff]
  %v460 = vld [vmem:[%s4 + $0x50] sm:$0xff]
  %v461 = vld [vmem:[%s4 + $0x58] sm:$0xff]
  %v462 = vld [vmem:[%s4 + $0x60] sm:$0xff]
  %v463 = vld [vmem:[%s4 + $0x68] sm:$0xff]
  %v464 = vld [vmem:[%s4 + $0x70] sm:$0xff]
  %v465 = vld [vmem:[%s4 + $0x78] sm:$0xff]
  %v466 = vld [vmem:[%s4 + $0x80] sm:$0xff]
  %v467 = vld [vmem:[%s4 + $0x88] sm:$0xff]
  %v468 = vld [vmem:[%s4 + $0x90] sm:$0xff]
  %v469 = vld [vmem:[%s4 + $0x98] sm:$0xff]
  %v470 = vld [vmem:[%s4 + $0xa0] sm:$0xff]
  %v471 = vld [vmem:[%s4 + $0xa8] sm:$0xff]
  %v472 = vld [vmem:[%s4 + $0xb0] sm:$0xff]
  %v473 = vld [vmem:[%s4 + $0xb8] sm:$0xff]
  %v474 = vld [vmem:[%s4 + $0xc0] sm:$0xff]
  %v475 = vld [vmem:[%s4 + $0xc8] sm:$0xff]
  %v476 = vld [vmem:[%s4 + $0xd0] sm:$0xff]
  %v477 = vld [vmem:[%s4 + $0xd8] sm:$0xff]
  %v478 = vld [vmem:[%s4 + $0xe0] sm:$0xff]
  %v479 = vld [vmem:[%s4 + $0xe8] sm:$0xff]
  %v480 = vld [vmem:[%s4 + $0xf0] sm:$0xff]
  %v481 = vld [vmem:[%s4 + $0xf8] sm:$0xff]
  %482 = vmatprep.subr.mxu0 0.0
  %483 = vmatpush1.msra.mxu0 %v466
  %484 = vmatprep.subr.mxu0 0.0
  %485 = vmatpush1.msra.mxu0 %v467
  %486 = vmatprep.subr.mxu0 0.0
  %487 = vmatpush1.msra.mxu0 %v468
  %488 = vmatprep.subr.mxu0 0.0
  %489 = vmatpush1.msra.mxu0 %v469
  %490 = vmatprep.subr.mxu0 0.0
  %491 = vmatpush1.msra.mxu0 %v470
  %492 = vmatprep.subr.mxu0 0.0
  %493 = vmatpush1.msra.mxu0 %v471
  %494 = vmatprep.subr.mxu0 0.0
  %495 = vmatpush1.msra.mxu0 %v472
  %496 = vmatprep.subr.mxu0 0.0
  %497 = vmatpush1.msra.mxu0 %v473
  %498 = vmatprep.subr.mxu0 0.0
  %499 = vmatpush1.msra.mxu0 %v474
  %500 = vmatprep.subr.mxu0 0.0
  %501 = vmatpush1.msra.mxu0 %v475
  %502 = vmatprep.subr.mxu0 0.0
  %503 = vmatpush1.msra.mxu0 %v476
  %504 = vmatprep.subr.mxu0 0.0
  %505 = vmatpush1.msra.mxu0 %v477
  %506 = vmatprep.subr.mxu0 0.0
  %507 = vmatpush1.msra.mxu0 %v478
  %508 = vmatprep.subr.mxu0 0.0
  %509 = vmatpush1.msra.mxu0 %v479
  %510 = vmatprep.subr.mxu0 0.0
  %511 = vmatpush1.msra.mxu0 %v480
  %512 = vmatprep.subr.mxu0 0.0
  %513 = vmatpush1.msra.mxu0 %v481
  %514 = vmatprep.subr.mxu0 0.0
  %515 = vmatpush1.msra.mxu0 0.0
  %516 = vmatprep.subr.mxu0 0.0
  %517 = vmatpush1.msra.mxu0 0.0
  %518 = vmatprep.subr.mxu0 0.0
  %519 = vmatpush1.msra.mxu0 0.0
  %520 = vmatprep.subr.mxu0 0.0
  %521 = vmatpush1.msra.mxu0 0.0
  %522 = vmatprep.subr.mxu0 0.0
  %523 = vmatpush1.msra.mxu0 0.0
  %524 = vmatprep.subr.mxu0 0.0
  %525 = vmatpush1.msra.mxu0 0.0
  %526 = vmatprep.subr.mxu0 0.0
  %527 = vmatpush1.msra.mxu0 0.0
  %528 = vmatprep.subr.mxu0 0.0
  %529 = vmatpush1.msra.mxu0 0.0
  %530 = vmatprep.subr.mxu0 0.0
  %531 = vmatpush1.msra.mxu0 0.0
  %532 = vmatprep.subr.mxu0 0.0
  %533 = vmatpush1.msra.mxu0 0.0
  %534 = vmatprep.subr.mxu0 0.0
  %535 = vmatpush1.msra.mxu0 0.0
  %536 = vmatprep.subr.mxu0 0.0
  %537 = vmatpush1.msra.mxu0 0.0
  %538 = vmatprep.subr.mxu0 0.0
  %539 = vmatpush1.msra.mxu0 0.0
  %540 = vmatprep.subr.mxu0 0.0
  %541 = vmatpush1.msra.mxu0 0.0
  %542 = vmatprep.subr.mxu0 0.0
  %543 = vmatpush1.msra.mxu0 0.0
  %544 = vmatprep.subr.mxu0 0.0
  %545 = vmatpush1.msra.mxu0 0.0
  %546 = vmatprep.mubr.f32.mxu0 0.0
  %547 = vmatmul.mubr.f32.gmra.mrb[0].mxu0 %v434
  %v548 = vpop.f32.mrb[0].mxu0
  %v549 = vadd.f32 0.0, %v548
  %v550 = vpop.f32.mrb[0].mxu0
  %551 = vmatprep.mubr.f32.mxu0 0.0
  %552 = vmatmul.mubr.f32.gmra.mrb[0].mxu0 %v435
  %v553 = vpop.f32.mrb[0].mxu0
  %v554 = vadd.f32 0.0, %v553
  %v555 = vpop.f32.mrb[0].mxu0
  %556 = vmatprep.mubr.f32.mxu0 0.0
  %557 = vmatmul.mubr.f32.gmra.mrb[0].mxu0 %v436
  %v558 = vpop.f32.mrb[0].mxu0
  %v559 = vadd.f32 0.0, %v558
  %v560 = vpop.f32.mrb[0].mxu0
  %561 = vmatprep.mubr.f32.mxu0 0.0
  %562 = vmatmul.mubr.f32.gmra.mrb[0].mxu0 %v437
  %v563 = vpop.f32.mrb[0].mxu0
  %v564 = vadd.f32 0.0, %v563
  %v565 = vpop.f32.mrb[0].mxu0
  %566 = vdwg.mxu0
  %567 = vmatprep.subr.mxu0 0.0
  %568 = vmatpush1.msra.mxu0 %v450
  %569 = vmatprep.subr.mxu0 0.0
  %570 = vmatpush1.msra.mxu0 %v451
  %571 = vmatprep.subr.mxu0 0.0
  %572 = vmatpush1.msra.mxu0 %v452
  %573 = vmatprep.subr.mxu0 0.0
  %574 = vmatpush1.msra.mxu0 %v453
  %575 = vmatprep.subr.mxu0 0.0
  %576 = vmatpush1.msra.mxu0 %v454
  %577 = vmatprep.subr.mxu0 0.0
  %578 = vmatpush1.msra.mxu0 %v455
  %579 = vmatprep.subr.mxu0 0.0
  %580 = vmatpush1.msra.mxu0 %v456
  %581 = vmatprep.subr.mxu0 0.0
  %582 = vmatpush1.msra.mxu0 %v457
  %583 = vmatprep.subr.mxu0 0.0
  %584 = vmatpush1.msra.mxu0 %v458
  %585 = vmatprep.subr.mxu0 0.0
  %586 = vmatpush1.msra.mxu0 %v459
  %587 = vmatprep.subr.mxu0 0.0
  %588 = vmatpush1.msra.mxu0 %v460
  %589 = vmatprep.subr.mxu0 0.0
  %590 = vmatpush1.msra.mxu0 %v461
  %591 = vmatprep.subr.mxu0 0.0
  %592 = vmatpush1.msra.mxu0 %v462
  %593 = vmatprep.subr.mxu0 0.0
  %594 = vmatpush1.msra.mxu0 %v463
  %595 = vmatprep.subr.mxu0 0.0
  %596 = vmatpush1.msra.mxu0 %v464
  %597 = vmatprep.subr.mxu0 0.0
  %598 = vmatpush1.msra.mxu0 %v465
  %599 = vmatprep.subr.mxu0 0.0
  %600 = vmatpush1.msra.mxu0 0.0
  %601 = vmatprep.subr.mxu0 0.0
  %602 = vmatpush1.msra.mxu0 0.0
  %603 = vmatprep.subr.mxu0 0.0
  %604 = vmatpush1.msra.mxu0 0.0
  %605 = vmatprep.subr.mxu0 0.0
  %606 = vmatpush1.msra.mxu0 0.0
  %607 = vmatprep.subr.mxu0 0.0
  %608 = vmatpush1.msra.mxu0 0.0
  %609 = vmatprep.subr.mxu0 0.0
  %610 = vmatpush1.msra.mxu0 0.0
  %611 = vmatprep.subr.mxu0 0.0
  %612 = vmatpush1.msra.mxu0 0.0
  %613 = vmatprep.subr.mxu0 0.0
  %614 = vmatpush1.msra.mxu0 0.0
  %615 = vmatprep.subr.mxu0 0.0
  %616 = vmatpush1.msra.mxu0 0.0
  %617 = vmatprep.subr.mxu0 0.0
  %618 = vmatpush1.msra.mxu0 0.0
  %619 = vmatprep.subr.mxu0 0.0
  %620 = vmatpush1.msra.mxu0 0.0
  %621 = vmatprep.subr.mxu0 0.0
  %622 = vmatpush1.msra.mxu0 0.0
  %623 = vmatprep.subr.mxu0 0.0
  %624 = vmatpush1.msra.mxu0 0.0
  %625 = vmatprep.subr.mxu0 0.0
  %626 = vmatpush1.msra.mxu0 0.0
  %627 = vmatprep.subr.mxu0 0.0
  %628 = vmatpush1.msra.mxu0 0.0
  %629 = vmatprep.subr.mxu0 0.0
  %630 = vmatpush1.msra.mxu0 0.0
  %631 = vmatprep.mubr.f32.mxu0 0.0
  %632 = vmatmul.mubr.f32.gmra.mrb[0].mxu0 %v442
  %v633 = vpop.f32.mrb[0].mxu0
  %v634 = vadd.f32 %v549, %v633
  %v635 = vpop.f32.mrb[0].mxu0
  %636 = vmatprep.mubr.f32.mxu0 0.0
  %637 = vmatmul.mubr.f32.gmra.mrb[0].mxu0 %v443
  %v638 = vpop.f32.mrb[0].mxu0
  %v639 = vadd.f32 %v554, %v638
  %v640 = vpop.f32.mrb[0].mxu0
  %641 = vmatprep.mubr.f32.mxu0 0.0
  %642 = vmatmul.mubr.f32.gmra.mrb[0].mxu0 %v444
  %v643 = vpop.f32.mrb[0].mxu0
  %v644 = vadd.f32 %v559, %v643
  %v645 = vpop.f32.mrb[0].mxu0
  %646 = vmatprep.mubr.f32.mxu0 0.0
  %647 = vmatmul.mubr.f32.gmra.mrb[0].mxu0 %v445
  %v648 = vpop.f32.mrb[0].mxu0
  %v649 = vadd.f32 %v564, %v648
  %v650 = vpop.f32.mrb[0].mxu0
  %651 = vdwg.mxu0
  %v652 = vld [vmem:[%s4 + $0x100] sm:$0xff]
  %v653 = vld [vmem:[%s4 + $0x108] sm:$0xff]
  %v654 = vld [vmem:[%s4 + $0x110] sm:$0xff]
  %v655 = vld [vmem:[%s4 + $0x118] sm:$0xff]
  %v656 = vld [vmem:[%s4 + $0x120] sm:$0xff]
  %v657 = vld [vmem:[%s4 + $0x128] sm:$0xff]
  %v658 = vld [vmem:[%s4 + $0x130] sm:$0xff]
  %v659 = vld [vmem:[%s4 + $0x138] sm:$0xff]
  %v660 = vld [vmem:[%s4 + $0x140] sm:$0xff]
  %v661 = vld [vmem:[%s4 + $0x148] sm:$0xff]
  %v662 = vld [vmem:[%s4 + $0x150] sm:$0xff]
  %v663 = vld [vmem:[%s4 + $0x158] sm:$0xff]
  %v664 = vld [vmem:[%s4 + $0x160] sm:$0xff]
  %v665 = vld [vmem:[%s4 + $0x168] sm:$0xff]
  %v666 = vld [vmem:[%s4 + $0x170] sm:$0xff]
  %v667 = vld [vmem:[%s4 + $0x178] sm:$0xff]
  %668 = vmatprep.subr.mxu0 0.0
  %669 = vmatpush1.msra.mxu0 %v652
  %670 = vmatprep.subr.mxu0 0.0
  %671 = vmatpush1.msra.mxu0 %v653
  %672 = vmatprep.subr.mxu0 0.0
  %673 = vmatpush1.msra.mxu0 %v654
  %674 = vmatprep.subr.mxu0 0.0
  %675 = vmatpush1.msra.mxu0 %v655
  %676 = vmatprep.subr.mxu0 0.0
  %677 = vmatpush1.msra.mxu0 %v656
  %678 = vmatprep.subr.mxu0 0.0
  %679 = vmatpush1.msra.mxu0 %v657
  %680 = vmatprep.subr.mxu0 0.0
  %681 = vmatpush1.msra.mxu0 %v658
  %682 = vmatprep.subr.mxu0 0.0
  %683 = vmatpush1.msra.mxu0 %v659
  %684 = vmatprep.subr.mxu0 0.0
  %685 = vmatpush1.msra.mxu0 %v660
  %686 = vmatprep.subr.mxu0 0.0
  %687 = vmatpush1.msra.mxu0 %v661
  %688 = vmatprep.subr.mxu0 0.0
  %689 = vmatpush1.msra.mxu0 %v662
  %690 = vmatprep.subr.mxu0 0.0
  %691 = vmatpush1.msra.mxu0 %v663
  %692 = vmatprep.subr.mxu0 0.0
  %693 = vmatpush1.msra.mxu0 %v664
  %694 = vmatprep.subr.mxu0 0.0
  %695 = vmatpush1.msra.mxu0 %v665
  %696 = vmatprep.subr.mxu0 0.0
  %697 = vmatpush1.msra.mxu0 %v666
  %698 = vmatprep.subr.mxu0 0.0
  %699 = vmatpush1.msra.mxu0 %v667
  %700 = vmatprep.subr.mxu0 0.0
  %701 = vmatpush1.msra.mxu0 0.0
  %702 = vmatprep.subr.mxu0 0.0
  %703 = vmatpush1.msra.mxu0 0.0
  %704 = vmatprep.subr.mxu0 0.0
  %705 = vmatpush1.msra.mxu0 0.0
  %706 = vmatprep.subr.mxu0 0.0
  %707 = vmatpush1.msra.mxu0 0.0
  %708 = vmatprep.subr.mxu0 0.0
  %709 = vmatpush1.msra.mxu0 0.0
  %710 = vmatprep.subr.mxu0 0.0
  %711 = vmatpush1.msra.mxu0 0.0
  %712 = vmatprep.subr.mxu0 0.0
  %713 = vmatpush1.msra.mxu0 0.0
  %714 = vmatprep.subr.mxu0 0.0
  %715 = vmatpush1.msra.mxu0 0.0
  %716 = vmatprep.subr.mxu0 0.0
  %717 = vmatpush1.msra.mxu0 0.0
  %718 = vmatprep.subr.mxu0 0.0
  %719 = vmatpush1.msra.mxu0 0.0
  %720 = vmatprep.subr.mxu0 0.0
  %721 = vmatpush1.msra.mxu0 0.0
  %722 = vmatprep.subr.mxu0 0.0
  %723 = vmatpush1.msra.mxu0 0.0
  %724 = vmatprep.subr.mxu0 0.0
  %725 = vmatpush1.msra.mxu0 0.0
  %726 = vmatprep.subr.mxu0 0.0
  %727 = vmatpush1.msra.mxu0 0.0
  %728 = vmatprep.subr.mxu0 0.0
  %729 = vmatpush1.msra.mxu0 0.0
  %730 = vmatprep.subr.mxu0 0.0
  %731 = vmatpush1.msra.mxu0 0.0
  %732 = vmatprep.mubr.f32.mxu0 0.0
  %733 = vmatmul.mubr.f32.gmra.mrb[0].mxu0 %v446
  %v734 = vpop.f32.mrb[0].mxu0
  %v735 = vadd.f32 0.0, %v734
  %v736 = vpop.f32.mrb[0].mxu0
  %737 = vmatprep.mubr.f32.mxu0 0.0
  %738 = vmatmul.mubr.f32.gmra.mrb[0].mxu0 %v447
  %v739 = vpop.f32.mrb[0].mxu0
  %v740 = vadd.f32 0.0, %v739
  %v741 = vpop.f32.mrb[0].mxu0
  %742 = vmatprep.mubr.f32.mxu0 0.0
  %743 = vmatmul.mubr.f32.gmra.mrb[0].mxu0 %v448
  %v744 = vpop.f32.mrb[0].mxu0
  %v745 = vadd.f32 0.0, %v744
  %v746 = vpop.f32.mrb[0].mxu0
  %747 = vmatprep.mubr.f32.mxu0 0.0
  %748 = vmatmul.mubr.f32.gmra.mrb[0].mxu0 %v449
  %v749 = vpop.f32.mrb[0].mxu0
  %v750 = vadd.f32 0.0, %v749
  %v751 = vpop.f32.mrb[0].mxu0
  %752 = vdwg.mxu0
  %v753 = vadd.f32 %v634, %v735
  %v754 = vadd.f32 %v639, %v740
  %v755 = vadd.f32 %v644, %v745
  %v756 = vadd.f32 %v649, %v750
  %v757 = vadd.f32 %v753, %v754
  %v758 = vadd.f32 %v757, %v755
  %v759 = vadd.f32 %v758, %v756
  %v760 = vrot.slane %v759, 4
  %v761 = vadd.f32 %v759, %v760
  %v762 = vrot.slane %v761, 2
  %v763 = vadd.f32 %v761, %v762
  %v764 = vrot.slane %v763, 1
  %v765 = vadd.f32 %v763, %v764
  %766 = vrot.lane.b32.xlu0 %v765, 64
  %v767 = vpop.permute.xlu0 %766
  %v768 = vadd.f32 %v765, %v767
  %769 = vrot.lane.b32.xlu0 %v768, 32
  %v770 = vpop.permute.xlu0 %769
  %v771 = vadd.f32 %v768, %v770
  %772 = vrot.lane.b32.xlu0 %v771, 16
  %v773 = vpop.permute.xlu0 %772
  %v774 = vadd.f32 %v771, %v773
  %775 = vrot.lane.b32.xlu0 %v774, 8
  %v776 = vpop.permute.xlu0 %775
  %v777 = vadd.f32 %v774, %v776
  %v778 = vmul.f32 %v753, %v753
  %v779 = vmul.f32 %v754, %v754
  %v780 = vmul.f32 %v755, %v755
  %v781 = vmul.f32 %v756, %v756
  %v782 = vadd.f32 %v778, %v779
  %v783 = vadd.f32 %v782, %v780
  %v784 = vadd.f32 %v783, %v781
  %v785 = vrot.slane %v784, 4
  %v786 = vadd.f32 %v784, %v785
  %v787 = vrot.slane %v786, 2
  %v788 = vadd.f32 %v786, %v787
  %v789 = vrot.slane %v788, 1
  %v790 = vadd.f32 %v788, %v789
  %791 = vrot.lane.b32.xlu0 %v790, 64
  %v792 = vpop.permute.xlu0 %791
  %v793 = vadd.f32 %v790, %v792
  %794 = vrot.lane.b32.xlu0 %v793, 32
  %v795 = vpop.permute.xlu0 %794
  %v796 = vadd.f32 %v793, %v795
  %797 = vrot.lane.b32.xlu0 %v796, 16
  %v798 = vpop.permute.xlu0 %797
  %v799 = vadd.f32 %v796, %v798
  %800 = vrot.lane.b32.xlu0 %v799, 8
  %v801 = vpop.permute.xlu0 %800
  %v802 = vadd.f32 %v799, %v801
  %v803 = vmul.f32 %v777, 0.001953125
  %v804 = vmul.f32 %v802, 0.001953125
  %v805 = vmul.f32 %v803, %v803
  %v806 = vsub.f32 %v804, %v805
  %v807 = vld [vmem:[%s5] sm:$0x1]
  %v808 = vadd.f32 %v806, 1e-05
  %v809 = vrsqrt.pop %v808
  %v810 = vmul.f32 %v807, %v809
  %v811 = vld [vmem:[%s6] sm:$0x1]
  %v812 = vmul.f32 %v803, %v810
  %v813 = vsub.f32 %v811, %v812
  %v815 = vlaneseq
  %v816 = vshrl.u32 %v815, 7
  %v817 = vsub.s32 0, %v816
  %v818 = vrot.slane %v810, %v817
  %v820 = vmul.f32 %v753, %v818
  %v821 = vmul.f32 %v754, %v818
  %v822 = vmul.f32 %v755, %v818
  %v823 = vmul.f32 %v756, %v818
  %v825 = vlaneseq
  %v826 = vshrl.u32 %v825, 7
  %v827 = vsub.s32 0, %v826
  %v828 = vrot.slane %v813, %v827
  %v830 = vadd.f32 %v820, %v828
  %v831 = vadd.f32 %v821, %v828
  %v832 = vadd.f32 %v822, %v828
  %v833 = vadd.f32 %v823, %v828
  %v834 = vadd.f32 %v830, %v26
  %v835 = vadd.f32 %v831, %v27
  %v836 = vadd.f32 %v832, %v28
  %v837 = vadd.f32 %v833, %v29
  %v838 = vmul.f32 %v834, 0.01
  %v839 = vmul.f32 %v835, 0.01
  %v840 = vmul.f32 %v836, 0.01
  %v841 = vmul.f32 %v837, 0.01
  %v842 = vmax.f32 %v834, %v838
  %v843 = vmax.f32 %v835, %v839
  %v844 = vmax.f32 %v836, %v840
  %v845 = vmax.f32 %v837, %v841
  %846 = vst [vmem:[%s7] sm:$0xff] %v842
  %847 = vst [vmem:[%s7 + $0x8] sm:$0xff] %v843
  %848 = vst [vmem:[%s7 + $0x10] sm:$0xff] %v844
  %849 = vst [vmem:[%s7 + $0x18] sm:$0xff] %v845
  // Predicated region
  $region30: #{identity_block.1} parent=0 // pred_check
    _
  $region31: #{identity_block.1} parent=0 // pred_check_branch
    %851 = sbr.rel (0) target = $region33
  $region32: #{identity_block.1} parent=0 // pred_region
    _
  $region33: #{identity_block.1} parent=0 // pred_fallthru
    _
  // Predicated region
  $region34: #{identity_block.1} parent=0 // pred_check
    _
  $region35: #{identity_block.1} parent=0 // pred_check_branch
    %853 = sbr.rel (0) target = $region37
  $region36: #{identity_block.1} parent=0 // pred_region
    _
  $region37: #{identity_block.1} parent=0 // pred_fallthru
    _

</llo_original>
